<compile_context>
chip_gen: v7x
topology: tpu7x:2x2x1
jax: 0.10.0
libtpu: 0.0.40
codegen_flags: <defaults>
</compile_context>

<pallas_src>
import functools

import jax
import jax.numpy as jnp
from jax.experimental import pallas as pl
from jax.experimental.pallas import tpu as pltpu


# ---------------------------------------------------------------------------
# Kernel 1: point MLP (3 -> 64 -> 128 -> 1024) + per-batch max pool.
# ---------------------------------------------------------------------------
def point_mlp_pool_kernel(x_ref, w1, t1, w2, t2, w3, t3, g_ref, *, n_points):
    x = x_ref[...]                                           # (TB*N, 3) f32

    # Layer 1 (3 -> 64): K=3 would use 3/128 of the MXU depth, so do it as
    # three VPU broadcast-FMAs. BN scale is pre-folded into w1, bias into t1.
    w1v = w1[...]                                            # (3, 64) f32
    h = (x[:, 0:1] * w1v[0:1, :]
         + x[:, 1:2] * w1v[1:2, :]
         + x[:, 2:3] * w1v[2:3, :]) + t1[...]
    h = jnp.maximum(h, 0.0)                                  # (TB*N, 64) f32

    # Layer 2 (64 -> 128): bf16 MXU matmul, f32 accumulation; fused BN/ReLU.
    h = jnp.dot(h.astype(jnp.bfloat16), w2[...],
                preferred_element_type=jnp.float32)
    h = jnp.maximum(h + t2[...], 0.0)                        # (TB*N, 128) f32

    # Layer 3 (128 -> 1024)
    h = jnp.dot(h.astype(jnp.bfloat16), w3[...],
                preferred_element_type=jnp.float32)
    h = jnp.maximum(h + t3[...], 0.0)                        # (TB*N, 1024) f32

    # torch.max(x, dim=-2): max over the points axis, per batch element.
    tb = h.shape[0] // n_points
    g = jnp.max(h.reshape(tb, n_points, h.shape[-1]), axis=1)  # (TB, 1024)
    g_ref[...] = g.astype(g_ref.dtype)


# ---------------------------------------------------------------------------
# Kernel 2: fc head over pooled features (fc1 + NormAct + fc2), batched over B.
# ---------------------------------------------------------------------------
def head_kernel(g_ref, w4, t4, w5, b5, o_ref):
    # fc1 (1024 -> 512) + folded BN/ReLU, one batched matmul over all rows.
    f = jnp.dot(g_ref[...], w4[...], preferred_element_type=jnp.float32)
    f = jnp.maximum(f + t4[...], 0.0)
    # fc2 (512 -> 256), no norm / activation.
    o = jnp.dot(f.astype(jnp.bfloat16), w5[...],
                preferred_element_type=jnp.float32)
    o_ref[...] = o + b5[...]


def _const_spec(a):
    nd = a.ndim
    return pl.BlockSpec(a.shape, lambda b, _nd=nd: (0,) * _nd)


def t1_forward(x, params, *, rows_per_step=256):
    """T1 forward. x: (B, N, 3) float32 -> (B, 256) float32."""
    (w1, t1, w2, t2, w3, t3, w4, t4, w5, b5) = params
    B, N, _ = x.shape

    # --- stage 1: point MLP + per-batch max pool ---------------------------
    # TB batch elements per grid step so the MXU sees M ~ rows_per_step rows.
    # (At large B this still leaves >= 2 parallel grid steps for v7x's 2 TCs.)
    tb = max(1, min(B, rows_per_step // N))
    x_rows = x.reshape(B * N, 3)

    g = pl.pallas_call(
        functools.partial(point_mlp_pool_kernel, n_points=N),
        out_shape=jax.ShapeDtypeStruct((B, 1024), jnp.bfloat16),
        grid=(pl.cdiv(B, tb),),
        in_specs=[pl.BlockSpec((tb * N, 3), lambda b: (b, 0)),
                  _const_spec(w1), _const_spec(t1),
                  _const_spec(w2), _const_spec(t2),
                  _const_spec(w3), _const_spec(t3)],
        out_specs=pl.BlockSpec((tb, 1024), lambda b: (b, 0)),
        compiler_params=pltpu.CompilerParams(dimension_semantics=("parallel",)),
    )(x_rows, w1, t1, w2, t2, w3, t3)

    # --- stage 2: fc1/fc2 as a single batched matmul over pooled rows ------
    tbh = min(B, 256)
    out = pl.pallas_call(
        head_kernel,
        out_shape=jax.ShapeDtypeStruct((B, 256), jnp.float32),
        grid=(pl.cdiv(B, tbh),),
        in_specs=[pl.BlockSpec((tbh, 1024), lambda b: (b, 0)),
                  _const_spec(w4), _const_spec(t4),
                  _const_spec(w5), _const_spec(b5)],
        out_specs=pl.BlockSpec((tbh, 256), lambda b: (b, 0)),
        compiler_params=pltpu.CompilerParams(dimension_semantics=("parallel",)),
    )(g, w4, t4, w5, b5)
    return out


# ---------------------------------------------------------------------------
# Parameters: raw (Linear + BatchNorm1d) form, and folded/casted kernel form.
# ---------------------------------------------------------------------------
def init_raw_params(key, eps_unused=None):
    dims = [(3, 64), (64, 128), (128, 1024), (1024, 512), (512, 256)]
    has_norm = [True, True, True, True, False]
    keys = jax.random.split(key, 6 * len(dims))
    ki = 0
    raw = []
    for (din, dout), norm in zip(dims, has_norm):
        layer = {
            "w": jax.random.normal(keys[ki], (din, dout), jnp.float32) / jnp.sqrt(din),
            "b": 0.1 * jax.random.normal(keys[ki + 1], (dout,), jnp.float32),
        }
        ki += 2
        if norm:
            layer["gamma"] = 1.0 + 0.1 * jax.random.normal(keys[ki], (dout,), jnp.float32)
            layer["beta"] = 0.1 * jax.random.normal(keys[ki + 1], (dout,), jnp.float32)
            layer["mean"] = 0.1 * jax.random.normal(keys[ki + 2], (dout,), jnp.float32)
            layer["var"] = 1.0 + jnp.abs(0.2 * jax.random.normal(keys[ki + 3], (dout,), jnp.float32))
            ki += 4
        raw.append(layer)
    return raw


def prepare_params(raw, eps=1e-5):
    """Fold eval-mode BN + Linear bias into (W', t'); cast MXU weights to bf16."""
    prepped = []
    for i, layer in enumerate(raw):
        w, b = layer["w"], layer["b"]
        if "gamma" in layer:
            s = layer["gamma"] / jnp.sqrt(layer["var"] + eps)
            w = w * s[None, :]
            t = layer["beta"] - layer["mean"] * s + b * s
        else:
            t = b
        if i == 0:
            prepped += [w.astype(jnp.float32), t[None, :].astype(jnp.float32)]   # VPU layer, f32
        else:
            prepped += [w.astype(jnp.bfloat16), t[None, :].astype(jnp.float32)]
    return prepped


# ---------------------------------------------------------------------------
# Pure-JAX references.
# ---------------------------------------------------------------------------
def t1_ref_f32(x, raw, eps=1e-5):
    """Intended forward pass in full f32 (unfolded Linear + BN + ReLU)."""
    def norm_act(h, layer):
        s = layer["gamma"] / jnp.sqrt(layer["var"] + eps)
        return jnp.maximum((h - layer["mean"]) * s + layer["beta"], 0.0)

    h = x
    for layer in raw[:3]:
        h = norm_act(h @ layer["w"] + layer["b"], layer)
    g = jnp.max(h, axis=-2)
    f = norm_act(g @ raw[3]["w"] + raw[3]["b"], raw[3])
    return f @ raw[4]["w"] + raw[4]["b"]


def t1_ref_prepared(x, params):
    """jnp reference mirroring the kernel math (folded params, bf16 matmuls)."""
    (w1, t1, w2, t2, w3, t3, w4, t4, w5, b5) = params
    h = jnp.maximum(x[..., 0:1] * w1[0] + x[..., 1:2] * w1[1] + x[..., 2:3] * w1[2] + t1, 0.0)
    h = jnp.maximum(jnp.dot(h.astype(jnp.bfloat16), w2, preferred_element_type=jnp.float32) + t2, 0.0)
    h = jnp.maximum(jnp.dot(h.astype(jnp.bfloat16), w3, preferred_element_type=jnp.float32) + t3, 0.0)
    g = jnp.max(h, axis=-2).astype(jnp.bfloat16)
    f = jnp.maximum(jnp.dot(g, w4, preferred_element_type=jnp.float32) + t4, 0.0)
    return jnp.dot(f.astype(jnp.bfloat16), w5, preferred_element_type=jnp.float32) + b5


if __name__ == "__main__":
    key = jax.random.PRNGKey(0)
    k_x, k_p = jax.random.split(key)

    B, N = 2, 16                                   # batch=2, 16 points, 3 coords
    x = jax.random.normal(k_x, (B, N, 3), jnp.float32)

    raw = init_raw_params(k_p)
    params = prepare_params(raw)

    out = t1_forward(x, params)
    out = jax.block_until_ready(out)
    assert out.shape == (B, 256), out.shape

    ref_folded = t1_ref_prepared(x, params)        # same folded/bf16 math
    ref_f32 = t1_ref_f32(x, raw)                   # original unfolded f32 math
    err_folded = float(jnp.max(jnp.abs(out - ref_folded)))
    err_f32 = float(jnp.max(jnp.abs(out - ref_f32)))
    assert jnp.allclose(out, ref_folded, rtol=1e-2, atol=1e-2), err_folded
    assert jnp.allclose(out, ref_f32, rtol=5e-2, atol=5e-2), err_f32

    print("KERNEL_OK")
</pallas_src>

<mosaic_0001>
module attributes {stable_mosaic.version = 11 : i64} {
  func.func @point_mlp_pool_kernel(%arg0: i32, %arg1: memref<32x3xf32, #tpu.memory_space<vmem>>, %arg2: memref<3x64xf32, #tpu.memory_space<vmem>>, %arg3: memref<1x64xf32, #tpu.memory_space<vmem>>, %arg4: memref<64x128xbf16, #tpu.memory_space<vmem>>, %arg5: memref<1x128xf32, #tpu.memory_space<vmem>>, %arg6: memref<128x1024xbf16, #tpu.memory_space<vmem>>, %arg7: memref<1x1024xf32, #tpu.memory_space<vmem>>, %arg8: memref<2x1024xbf16, #tpu.memory_space<vmem>>) attributes {dimension_semantics = [#tpu.dimension_semantics<parallel>], iteration_bounds = array<i64: 1>, scalar_prefetch = 0 : i64, scratch_operands = 0 : i64, tpu.core_type = #tpu.core_type<tc>, window_params = [{transform_indices = @transform_0, window_bounds = array<i64: 32, 3>}, {pipeline_mode = #tpu.pipeline_mode<synchronous>, transform_indices = @transform_1, window_bounds = array<i64: 3, 64>}, {pipeline_mode = #tpu.pipeline_mode<synchronous>, transform_indices = @transform_2, window_bounds = array<i64: 1, 64>}, {pipeline_mode = #tpu.pipeline_mode<synchronous>, transform_indices = @transform_3, window_bounds = array<i64: 64, 128>}, {pipeline_mode = #tpu.pipeline_mode<synchronous>, transform_indices = @transform_4, window_bounds = array<i64: 1, 128>}, {pipeline_mode = #tpu.pipeline_mode<synchronous>, transform_indices = @transform_5, window_bounds = array<i64: 128, 1024>}, {pipeline_mode = #tpu.pipeline_mode<synchronous>, transform_indices = @transform_6, window_bounds = array<i64: 1, 1024>}, {transform_indices = @transform_7, window_bounds = array<i64: 2, 1024>}]} {
    %c0 = arith.constant 0 : index
    %c0_0 = arith.constant 0 : index
    %0 = vector.load %arg1[%c0, %c0_0] : memref<32x3xf32, #tpu.memory_space<vmem>>, vector<32x3xf32>
    %c0_1 = arith.constant 0 : index
    %c0_2 = arith.constant 0 : index
    %1 = vector.load %arg2[%c0_1, %c0_2] : memref<3x64xf32, #tpu.memory_space<vmem>>, vector<3x64xf32>
    %2 = vector.extract_strided_slice %0 {offsets = [0, 0], sizes = [32, 1], strides = [1, 1]} : vector<32x3xf32> to vector<32x1xf32>
    %3 = vector.extract_strided_slice %1 {offsets = [0, 0], sizes = [1, 64], strides = [1, 1]} : vector<3x64xf32> to vector<1x64xf32>
    %4 = vector.broadcast %2 : vector<32x1xf32> to vector<32x64xf32>
    %5 = vector.broadcast %3 : vector<1x64xf32> to vector<32x64xf32>
    %6 = arith.mulf %4, %5 : vector<32x64xf32>
    %7 = vector.extract_strided_slice %0 {offsets = [0, 1], sizes = [32, 1], strides = [1, 1]} : vector<32x3xf32> to vector<32x1xf32>
    %8 = vector.extract_strided_slice %1 {offsets = [1, 0], sizes = [1, 64], strides = [1, 1]} : vector<3x64xf32> to vector<1x64xf32>
    %9 = vector.broadcast %7 : vector<32x1xf32> to vector<32x64xf32>
    %10 = vector.broadcast %8 : vector<1x64xf32> to vector<32x64xf32>
    %11 = arith.mulf %9, %10 : vector<32x64xf32>
    %12 = arith.addf %6, %11 : vector<32x64xf32>
    %13 = vector.extract_strided_slice %0 {offsets = [0, 2], sizes = [32, 1], strides = [1, 1]} : vector<32x3xf32> to vector<32x1xf32>
    %14 = vector.extract_strided_slice %1 {offsets = [2, 0], sizes = [1, 64], strides = [1, 1]} : vector<3x64xf32> to vector<1x64xf32>
    %15 = vector.broadcast %13 : vector<32x1xf32> to vector<32x64xf32>
    %16 = vector.broadcast %14 : vector<1x64xf32> to vector<32x64xf32>
    %17 = arith.mulf %15, %16 : vector<32x64xf32>
    %18 = arith.addf %12, %17 : vector<32x64xf32>
    %c0_3 = arith.constant 0 : index
    %c0_4 = arith.constant 0 : index
    %19 = vector.load %arg3[%c0_3, %c0_4] : memref<1x64xf32, #tpu.memory_space<vmem>>, vector<1x64xf32>
    %20 = vector.broadcast %19 : vector<1x64xf32> to vector<32x64xf32>
    %21 = arith.addf %18, %20 : vector<32x64xf32>
    %cst = arith.constant 0.000000e+00 : f32
    %22 = vector.broadcast %cst : f32 to vector<32x64xf32>
    %23 = arith.maximumf %21, %22 : vector<32x64xf32>
    %24 = arith.truncf %23 : vector<32x64xf32> to vector<32x64xbf16>
    %c0_5 = arith.constant 0 : index
    %c0_6 = arith.constant 0 : index
    %25 = vector.load %arg4[%c0_5, %c0_6] : memref<64x128xbf16, #tpu.memory_space<vmem>>, vector<64x128xbf16>
    %cst_7 = arith.constant dense<0.000000e+00> : vector<32x128xf32>
    %26 = tpu.matmul %24, %25, %cst_7 {dimension_numbers = #tpu.dot_dimension_numbers<[1], [0], [0], [1], [0, 0, 1, 1], [], []>} : vector<32x64xbf16>, vector<64x128xbf16>, vector<32x128xf32> -> vector<32x128xf32>
    %c0_8 = arith.constant 0 : index
    %c0_9 = arith.constant 0 : index
    %27 = vector.load %arg5[%c0_8, %c0_9] : memref<1x128xf32, #tpu.memory_space<vmem>>, vector<1x128xf32>
    %28 = vector.broadcast %27 : vector<1x128xf32> to vector<32x128xf32>
    %29 = arith.addf %26, %28 : vector<32x128xf32>
    %cst_10 = arith.constant 0.000000e+00 : f32
    %30 = vector.broadcast %cst_10 : f32 to vector<32x128xf32>
    %31 = arith.maximumf %29, %30 : vector<32x128xf32>
    %32 = arith.truncf %31 : vector<32x128xf32> to vector<32x128xbf16>
    %c0_11 = arith.constant 0 : index
    %c0_12 = arith.constant 0 : index
    %33 = vector.load %arg6[%c0_11, %c0_12] : memref<128x1024xbf16, #tpu.memory_space<vmem>>, vector<128x1024xbf16>
    %cst_13 = arith.constant dense<0.000000e+00> : vector<32x1024xf32>
    %34 = tpu.matmul %32, %33, %cst_13 {dimension_numbers = #tpu.dot_dimension_numbers<[1], [0], [0], [1], [0, 0, 1, 1], [], []>} : vector<32x128xbf16>, vector<128x1024xbf16>, vector<32x1024xf32> -> vector<32x1024xf32>
    %c0_14 = arith.constant 0 : index
    %c0_15 = arith.constant 0 : index
    %35 = vector.load %arg7[%c0_14, %c0_15] : memref<1x1024xf32, #tpu.memory_space<vmem>>, vector<1x1024xf32>
    %36 = vector.broadcast %35 : vector<1x1024xf32> to vector<32x1024xf32>
    %37 = arith.addf %34, %36 : vector<32x1024xf32>
    %cst_16 = arith.constant 0.000000e+00 : f32
    %38 = vector.broadcast %cst_16 : f32 to vector<32x1024xf32>
    %39 = arith.maximumf %37, %38 : vector<32x1024xf32>
    %40 = vector.shape_cast %39 : vector<32x1024xf32> to vector<2x16x1024xf32>
    %cst_17 = arith.constant dense<0xFF800000> : vector<2x1024xf32>
    %41 = vector.multi_reduction <maximumf>, %40, %cst_17 [1] : vector<2x16x1024xf32> to vector<2x1024xf32>
    %42 = arith.truncf %41 : vector<2x1024xf32> to vector<2x1024xbf16>
    %c0_18 = arith.constant 0 : index
    %c0_19 = arith.constant 0 : index
    %43 = vector.load %arg8[%c0_18, %c0_19] : memref<2x1024xbf16, #tpu.memory_space<vmem>>, vector<2x1024xbf16>
    tpu.vector_store %arg8[%c0_18, %c0_19], %42 {strides = array<i32>} : memref<2x1024xbf16, #tpu.memory_space<vmem>>, vector<2x1024xbf16>,
    return
  }
  func.func @transform_0(%arg0: i32) -> (i32, i32) {
    %c0_i32 = arith.constant 0 : i32
    %c0_i32_0 = arith.constant 0 : i32
    return %arg0, %c0_i32 : i32, i32
  }
  func.func @transform_1(%arg0: i32) -> (i32, i32) {
    %c0_i32 = arith.constant 0 : i32
    %c0_i32_0 = arith.constant 0 : i32
    %c0_i32_1 = arith.constant 0 : i32
    return %c0_i32, %c0_i32_0 : i32, i32
  }
  func.func @transform_2(%arg0: i32) -> (i32, i32) {
    %c0_i32 = arith.constant 0 : i32
    %c0_i32_0 = arith.constant 0 : i32
    %c0_i32_1 = arith.constant 0 : i32
    return %c0_i32, %c0_i32_0 : i32, i32
  }
  func.func @transform_3(%arg0: i32) -> (i32, i32) {
    %c0_i32 = arith.constant 0 : i32
    %c0_i32_0 = arith.constant 0 : i32
    %c0_i32_1 = arith.constant 0 : i32
    return %c0_i32, %c0_i32_0 : i32, i32
  }
  func.func @transform_4(%arg0: i32) -> (i32, i32) {
    %c0_i32 = arith.constant 0 : i32
    %c0_i32_0 = arith.constant 0 : i32
    %c0_i32_1 = arith.constant 0 : i32
    return %c0_i32, %c0_i32_0 : i32, i32
  }
  func.func @transform_5(%arg0: i32) -> (i32, i32) {
    %c0_i32 = arith.constant 0 : i32
    %c0_i32_0 = arith.constant 0 : i32
    %c0_i32_1 = arith.constant 0 : i32
    return %c0_i32, %c0_i32_0 : i32, i32
  }
  func.func @transform_6(%arg0: i32) -> (i32, i32) {
    %c0_i32 = arith.constant 0 : i32
    %c0_i32_0 = arith.constant 0 : i32
    %c0_i32_1 = arith.constant 0 : i32
    return %c0_i32, %c0_i32_0 : i32, i32
  }
  func.func @transform_7(%arg0: i32) -> (i32, i32) {
    %c0_i32 = arith.constant 0 : i32
    %c0_i32_0 = arith.constant 0 : i32
    return %arg0, %c0_i32 : i32, i32
  }
}

</mosaic_0001>

<llo_original>
// kernel: tpu_custom_call.1
$region0: #{tpu_custom_call.1}
  #allocation0 [shape = 'u32[]', space=smem, size = 0x4, offset = 0x4, fixed_abs, tag = 'smem constant byte address 0x4 - core index']
  #allocation1 [shape = 'u32[144,128]{1,0:T(1,128)}', space=vmem, size = 0x12000, scoped, tag = 'internal scratch']
  %s0 = inlined_call_operand.vmem [shape: f32[32,3], index: 0, kind: input, shape index: {}]
  %s1 = inlined_call_operand.vmem [shape: f32[3,64], index: 1, kind: input, shape index: {}]
  %s2 = inlined_call_operand.vmem [shape: f32[1,64], index: 2, kind: input, shape index: {}]
  %s3 = inlined_call_operand.vmem [shape: bf16[64,128], index: 3, kind: input, shape index: {}]
  %s4 = inlined_call_operand.vmem [shape: f32[1,128], index: 4, kind: input, shape index: {}]
  %s5 = inlined_call_operand.hbm [shape: bf16[128,1024], index: 5, kind: input, shape index: {}]
  %s6 = inlined_call_operand.vmem [shape: f32[1,1024], index: 6, kind: input, shape index: {}]
  %s7 = inlined_call_operand.hbm [shape: bf16[2,1024], index: 7, kind: output, shape index: {}]
  %s8 = sld [smem:[#allocation0]]
  $region42: #{tpu_custom_call.1} parent=0
    _
  %s10 = ssub.s32 1, %s8
  %s11 = scalar_select 0, %s10, %s8
  $region1: #{tpu_custom_call.1} parent=0
    #allocation2 [shape = 'u8[262144]{0}', space=vmem, size = 0x40000, scoped, tag = 'input window, operand 5, single buffered']
    #allocation3 [shape = 's32[1]{0}', space=sflag, size = 0x4, scoped, tag = 'scoped memory for tpu_custom_call.1']
    #allocation4 [shape = 's32[1]{0}', space=sflag, size = 0x4, scoped, tag = 'scoped memory for tpu_custom_call.1']
    #allocation5 [shape = 'u8[4096]{0}', space=vmem, size = 0x1000, scoped, tag = 'output window, operand 0, single buffered']
    %12 = vsyncpa [#allocation3], 0
    %13 = vsyncpa [#allocation4], 0
    // Predicated region
    $region2: #{tpu_custom_call.1} parent=1 // pred_check
      _
    $region3: #{tpu_custom_call.1} parent=1 // pred_check_branch
      %15 = sbr.rel (0) target = $region5
    $region4: #{tpu_custom_call.1} parent=1 // pred_region
      _
    $region5: #{tpu_custom_call.1} parent=1 // pred_fallthru
      _
    // Predicated region
    $region6: #{tpu_custom_call.1} parent=1 // pred_check
      _
    $region7: #{tpu_custom_call.1} parent=1 // pred_check_branch
      %17 = sbr.rel (0) target = $region9
    $region8: #{tpu_custom_call.1} parent=1 // pred_region
      _
    $region9: #{tpu_custom_call.1} parent=1 // pred_fallthru
      _
    // Predicated region
    $region10: #{tpu_custom_call.1} parent=1 // pred_check
      _
    $region11: #{tpu_custom_call.1} parent=1 // pred_check_branch
      %19 = sbr.rel (0) target = $region13
    $region12: #{tpu_custom_call.1} parent=1 // pred_region
      _
    $region13: #{tpu_custom_call.1} parent=1 // pred_fallthru
      _
    // Predicated region
    $region14: #{tpu_custom_call.1} parent=1 // pred_check
      _
    $region15: #{tpu_custom_call.1} parent=1 // pred_check_branch
      %21 = sbr.rel (0) target = $region17
    $region16: #{tpu_custom_call.1} parent=1 // pred_region
      _
    $region17: #{tpu_custom_call.1} parent=1 // pred_fallthru
      _
    // Predicated region
    $region18: #{tpu_custom_call.1} parent=1 // pred_check
      _
    $region19: #{tpu_custom_call.1} parent=1 // pred_check_branch
      %23 = sbr.rel (0) target = $region21
    $region20: #{tpu_custom_call.1} parent=1 // pred_region
      _
    $region21: #{tpu_custom_call.1} parent=1 // pred_fallthru
      _
    // Predicated region
    $region22: #{tpu_custom_call.1} parent=1 // pred_check
      _
    $region23: #{tpu_custom_call.1} parent=1 // pred_check_branch
      %25 = sbr.rel (0) target = $region25
    $region24: #{tpu_custom_call.1} parent=1 // pred_region
      %s27 = ssub.s32 8192, 8192
      %28 = vsyncadd [#allocation3], %s27
      %s29 = sshll.u32 [#allocation2], 4
      %s30 = int_to_ptr.vmem [resolvable:$true] %s29
      %35 = dma.hbm_to_vmem [thread:$0]  %s5, 8192, %s30, [#allocation3], 512, 512, 32
    $region25: #{tpu_custom_call.1} parent=1 // pred_fallthru
      _
    // Predicated region
    $region26: #{tpu_custom_call.1} parent=1 // pred_check
      _
    $region27: #{tpu_custom_call.1} parent=1 // pred_check_branch
      %37 = sbr.rel (0) target = $region29
    $region28: #{tpu_custom_call.1} parent=1 // pred_region
      _
    $region29: #{tpu_custom_call.1} parent=1 // pred_fallthru
      _
    // Predicated region
    $region30: #{tpu_custom_call.1} parent=1 // pred_check
      _
    $region31: #{tpu_custom_call.1} parent=1 // pred_check_branch
      %39 = sbr.rel (0) target = $region33
    $region32: #{tpu_custom_call.1} parent=1 // pred_region
      %40 = dma.done [#allocation3], 8192
    $region33: #{tpu_custom_call.1} parent=1 // pred_fallthru
      _
    %v42 = vld [vmem:[%s0] sm:$0xff]
    %v43 = vld [vmem:[%s0 + $0x8] sm:$0xff]
    %v44 = vld [vmem:[%s0 + $0x10] sm:$0xff]
    %v45 = vld [vmem:[%s0 + $0x18] sm:$0xff]
    %v46 = vld [vmem:[%s1] sm:$0x7]
    %48 = vset.pattern.permute.xlu0 0
    %49 = vperm.xlu0 %48, %v42
    %v50 = vpop.permute.xlu0 %49
    %53 = vset.pattern.permute.xlu0 0
    %54 = vperm.xlu0 %53, %v43
    %v55 = vpop.permute.xlu0 %54
    %58 = vset.pattern.permute.xlu0 0
    %59 = vperm.xlu0 %58, %v44
    %v60 = vpop.permute.xlu0 %59
    %63 = vset.pattern.permute.xlu0 0
    %64 = vperm.xlu0 %63, %v45
    %v65 = vpop.permute.xlu0 %64
    %v67 = vlaneseq
    %v68 = vshrl.u32 %v67, 7
    %v69 = vsub.s32 0, %v68
    %v70 = vrot.slane %v46, %v69
    %v71 = vmul.f32 %v50, %v70
    %v72 = vmul.f32 %v55, %v70
    %v73 = vmul.f32 %v60, %v70
    %v74 = vmul.f32 %v65, %v70
    %75 = vset.pattern.permute.xlu0 1
    %76 = vperm.xlu0 %75, %v42
    %v77 = vpop.permute.xlu0 %76
    %79 = vset.pattern.permute.xlu0 1
    %80 = vperm.xlu0 %79, %v43
    %v81 = vpop.permute.xlu0 %80
    %83 = vset.pattern.permute.xlu0 1
    %84 = vperm.xlu0 %83, %v44
    %v85 = vpop.permute.xlu0 %84
    %87 = vset.pattern.permute.xlu0 1
    %88 = vperm.xlu0 %87, %v45
    %v89 = vpop.permute.xlu0 %88
    %v91 = vlaneseq
    %v92 = vshrl.u32 %v91, 7
    %v93 = vsub.s32 1, %v92
    %v94 = vrot.slane %v46, %v93
    %v95 = vmul.f32 %v77, %v94
    %v96 = vmul.f32 %v81, %v94
    %v97 = vmul.f32 %v85, %v94
    %v98 = vmul.f32 %v89, %v94
    %v99 = vadd.f32 %v71, %v95
    %v100 = vadd.f32 %v72, %v96
    %v101 = vadd.f32 %v73, %v97
    %v102 = vadd.f32 %v74, %v98
    %103 = vset.pattern.permute.xlu0 2
    %104 = vperm.xlu0 %103, %v42
    %v105 = vpop.permute.xlu0 %104
    %107 = vset.pattern.permute.xlu0 2
    %108 = vperm.xlu0 %107, %v43
    %v109 = vpop.permute.xlu0 %108
    %111 = vset.pattern.permute.xlu0 2
    %112 = vperm.xlu0 %111, %v44
    %v113 = vpop.permute.xlu0 %112
    %115 = vset.pattern.permute.xlu0 2
    %116 = vperm.xlu0 %115, %v45
    %v117 = vpop.permute.xlu0 %116
    %v119 = vlaneseq
    %v120 = vshrl.u32 %v119, 7
    %v121 = vsub.s32 2, %v120
    %v122 = vrot.slane %v46, %v121
    %v123 = vmul.f32 %v105, %v122
    %v124 = vmul.f32 %v109, %v122
    %v125 = vmul.f32 %v113, %v122
    %v126 = vmul.f32 %v117, %v122
    %v127 = vadd.f32 %v99, %v123
    %v128 = vadd.f32 %v100, %v124
    %v129 = vadd.f32 %v101, %v125
    %v130 = vadd.f32 %v102, %v126
    %v131 = vld [vmem:[%s2] sm:$0x1]
    %v133 = vlaneseq
    %v134 = vshrl.u32 %v133, 7
    %v135 = vsub.s32 0, %v134
    %v136 = vrot.slane %v131, %v135
    %v138 = vadd.f32 %v127, %v136
    %v139 = vadd.f32 %v128, %v136
    %v140 = vadd.f32 %v129, %v136
    %v141 = vadd.f32 %v130, %v136
    %v142 = vmax.f32 %v138, 0.0
    %v143 = vmax.f32 %v139, 0.0
    %v144 = vmax.f32 %v140, 0.0
    %v145 = vmax.f32 %v141, 0.0
    %v146 = vpack.c.bf16 %v143, %v142
    %v147 = vpack.c.bf16 %v145, %v144
    %v148 = vld [vmem:[%s3] sm:$0xf]
    %v149 = vld [vmem:[%s3 + $0x4] sm:$0xf]
    %v150 = vld [vmem:[%s3 + $0x8] sm:$0xf]
    %v151 = vld [vmem:[%s3 + $0xc] sm:$0xf]
    %v152 = vld [vmem:[%s3 + $0x10] sm:$0xf]
    %v153 = vld [vmem:[%s3 + $0x14] sm:$0xf]
    %v154 = vld [vmem:[%s3 + $0x18] sm:$0xf]
    %v155 = vld [vmem:[%s3 + $0x1c] sm:$0xf]
    %v156 = vld [vmem:[%s4] sm:$0x1]
    %v158 = vlaneseq
    %v159 = vshrl.u32 %v158, 7
    %v160 = vsub.s32 0, %v159
    %v161 = vrot.slane %v156, %v160
    %v171 = vunpack.c.l.b16 %v148
    %v172 = vunpack.c.l.b16 %v149
    %v173 = vunpack.c.l.b16 %v150
    %v174 = vunpack.c.l.b16 %v151
    %v175 = vunpack.c.l.b16 %v152
    %v176 = vunpack.c.l.b16 %v153
    %v177 = vunpack.c.l.b16 %v154
    %v178 = vunpack.c.l.b16 %v155
    %v179 = vpack.c.b16 %v172, %v171
    %v180 = vpack.c.b16 %v174, %v173
    %v181 = vpack.c.b16 %v176, %v175
    %v182 = vpack.c.b16 %v178, %v177
    %vm187 = vcmask 523264
    %v189 = vsel %vm187, %v146, 0
    %v192 = vsel %vm187, %v147, 0
    %194 = vmatprep.subr.bf16.mxu0 0
    %195 = vmatpush1.bf16.msra.mxu0 %v179
    %196 = vmatprep.subr.bf16.mxu0 0
    %197 = vmatpush1.bf16.msra.mxu0 %v180
    %198 = vmatprep.subr.bf16.mxu0 0
    %199 = vmatpush1.bf16.msra.mxu0 %v181
    %200 = vmatprep.subr.bf16.mxu0 0
    %201 = vmatpush1.bf16.msra.mxu0 %v182
    %202 = vmatprep.subr.bf16.mxu0 0
    %203 = vmatpush1.bf16.msra.mxu0 0
    %204 = vmatprep.subr.bf16.mxu0 0
    %205 = vmatpush1.bf16.msra.mxu0 0
    %206 = vmatprep.subr.bf16.mxu0 0
    %207 = vmatpush1.bf16.msra.mxu0 0
    %208 = vmatprep.subr.bf16.mxu0 0
    %209 = vmatpush1.bf16.msra.mxu0 0
    %210 = vmatprep.subr.bf16.mxu0 0
    %211 = vmatpush1.bf16.msra.mxu0 0
    %212 = vmatprep.subr.bf16.mxu0 0
    %213 = vmatpush1.bf16.msra.mxu0 0
    %214 = vmatprep.subr.bf16.mxu0 0
    %215 = vmatpush1.bf16.msra.mxu0 0
    %216 = vmatprep.subr.bf16.mxu0 0
    %217 = vmatpush1.bf16.msra.mxu0 0
    %218 = vmatprep.subr.bf16.mxu0 0
    %219 = vmatpush1.bf16.msra.mxu0 0
    %220 = vmatprep.subr.bf16.mxu0 0
    %221 = vmatpush1.bf16.msra.mxu0 0
    %222 = vmatprep.subr.bf16.mxu0 0
    %223 = vmatpush1.bf16.msra.mxu0 0
    %224 = vmatprep.subr.bf16.mxu0 0
    %225 = vmatpush1.bf16.msra.mxu0 0
    %226 = vmatprep.mubr.bf16.mxu0 0
    %227 = vmatmul.mubr.bf16.gmra.mrb[0].mxu0 %v189
    %v228 = vpop.f32.mrb[0].mxu0
    %v229 = vadd.f32 %v161, %v228
    %v230 = vpop.f32.mrb[0].mxu0
    %v231 = vpop.f32.mrb[0].mxu0
    %v232 = vadd.f32 %v161, %v231
    %v233 = vpop.f32.mrb[0].mxu0
    %234 = vmatprep.mubr.bf16.mxu0 0
    %235 = vmatmul.mubr.bf16.gmra.mrb[0].mxu0 %v192
    %v236 = vpop.f32.mrb[0].mxu0
    %v237 = vadd.f32 %v161, %v236
    %v238 = vpop.f32.mrb[0].mxu0
    %v239 = vpop.f32.mrb[0].mxu0
    %v240 = vadd.f32 %v161, %v239
    %v241 = vpop.f32.mrb[0].mxu0
    %242 = vdwg.mxu0
    %v243 = vmax.f32 %v229, 0.0
    %v244 = vmax.f32 %v232, 0.0
    %v245 = vmax.f32 %v237, 0.0
    %v246 = vmax.f32 %v240, 0.0
    %v247 = vpack.c.bf16 %v244, %v243
    %v248 = vpack.c.bf16 %v246, %v245
    %v249 = vld [vmem:[#allocation2] sm:$0xff]
    %v250 = vld [vmem:[#allocation2 + $0x8] sm:$0xff]
    %v251 = vld [vmem:[#allocation2 + $0x10] sm:$0xff]
    %v252 = vld [vmem:[#allocation2 + $0x18] sm:$0xff]
    %v253 = vld [vmem:[#allocation2 + $0x20] sm:$0xff]
    %v254 = vld [vmem:[#allocation2 + $0x28] sm:$0xff]
    %v255 = vld [vmem:[#allocation2 + $0x30] sm:$0xff]
    %v256 = vld [vmem:[#allocation2 + $0x38] sm:$0xff]
    %v257 = vld [vmem:[#allocation2 + $0x40] sm:$0xff]
    %v258 = vld [vmem:[#allocation2 + $0x48] sm:$0xff]
    %v259 = vld [vmem:[#allocation2 + $0x50] sm:$0xff]
    %v260 = vld [vmem:[#allocation2 + $0x58] sm:$0xff]
    %v261 = vld [vmem:[#allocation2 + $0x60] sm:$0xff]
    %v262 = vld [vmem:[#allocation2 + $0x68] sm:$0xff]
    %v263 = vld [vmem:[#allocation2 + $0x70] sm:$0xff]
    %v264 = vld [vmem:[#allocation2 + $0x78] sm:$0xff]
    %v265 = vld [vmem:[#allocation2 + $0x80] sm:$0xff]
    %v266 = vld [vmem:[#allocation2 + $0x88] sm:$0xff]
    %v267 = vld [vmem:[#allocation2 + $0x90] sm:$0xff]
    %v268 = vld [vmem:[#allocation2 + $0x98] sm:$0xff]
    %v269 = vld [vmem:[#allocation2 + $0xa0] sm:$0xff]
    %v270 = vld [vmem:[#allocation2 + $0xa8] sm:$0xff]
    %v271 = vld [vmem:[#allocation2 + $0xb0] sm:$0xff]
    %v272 = vld [vmem:[#allocation2 + $0xb8] sm:$0xff]
    %v273 = vld [vmem:[#allocation2 + $0xc0] sm:$0xff]
    %v274 = vld [vmem:[#allocation2 + $0xc8] sm:$0xff]
    %v275 = vld [vmem:[#allocation2 + $0xd0] sm:$0xff]
    %v276 = vld [vmem:[#allocation2 + $0xd8] sm:$0xff]
    %v277 = vld [vmem:[#allocation2 + $0xe0] sm:$0xff]
    %v278 = vld [vmem:[#allocation2 + $0xe8] sm:$0xff]
    %v279 = vld [vmem:[#allocation2 + $0xf0] sm:$0xff]
    %v280 = vld [vmem:[#allocation2 + $0xf8] sm:$0xff]
    %v281 = vld [vmem:[#allocation2 + $0x100] sm:$0xff]
    %v282 = vld [vmem:[#allocation2 + $0x108] sm:$0xff]
    %v283 = vld [vmem:[#allocation2 + $0x110] sm:$0xff]
    %v284 = vld [vmem:[#allocation2 + $0x118] sm:$0xff]
    %v285 = vld [vmem:[#allocation2 + $0x120] sm:$0xff]
    %v286 = vld [vmem:[#allocation2 + $0x128] sm:$0xff]
    %v287 = vld [vmem:[#allocation2 + $0x130] sm:$0xff]
    %v288 = vld [vmem:[#allocation2 + $0x138] sm:$0xff]
    %v289 = vld [vmem:[#allocation2 + $0x140] sm:$0xff]
    %v290 = vld [vmem:[#allocation2 + $0x148] sm:$0xff]
    %v291 = vld [vmem:[#allocation2 + $0x150] sm:$0xff]
    %v292 = vld [vmem:[#allocation2 + $0x158] sm:$0xff]
    %v293 = vld [vmem:[#allocation2 + $0x160] sm:$0xff]
    %v294 = vld [vmem:[#allocation2 + $0x168] sm:$0xff]
    %v295 = vld [vmem:[#allocation2 + $0x170] sm:$0xff]
    %v296 = vld [vmem:[#allocation2 + $0x178] sm:$0xff]
    %v297 = vld [vmem:[#allocation2 + $0x180] sm:$0xff]
    %v298 = vld [vmem:[#allocation2 + $0x188] sm:$0xff]
    %v299 = vld [vmem:[#allocation2 + $0x190] sm:$0xff]
    %v300 = vld [vmem:[#allocation2 + $0x198] sm:$0xff]
    %v301 = vld [vmem:[#allocation2 + $0x1a0] sm:$0xff]
    %v302 = vld [vmem:[#allocation2 + $0x1a8] sm:$0xff]
    %v303 = vld [vmem:[#allocation2 + $0x1b0] sm:$0xff]
    %v304 = vld [vmem:[#allocation2 + $0x1b8] sm:$0xff]
    %v305 = vld [vmem:[#allocation2 + $0x1c0] sm:$0xff]
    %v306 = vld [vmem:[#allocation2 + $0x1c8] sm:$0xff]
    %v307 = vld [vmem:[#allocation2 + $0x1d0] sm:$0xff]
    %v308 = vld [vmem:[#allocation2 + $0x1d8] sm:$0xff]
    %v309 = vld [vmem:[#allocation2 + $0x1e0] sm:$0xff]
    %v310 = vld [vmem:[#allocation2 + $0x1e8] sm:$0xff]
    %v311 = vld [vmem:[#allocation2 + $0x1f0] sm:$0xff]
    %v312 = vld [vmem:[#allocation2 + $0x1f8] sm:$0xff]
    %v313 = vld [vmem:[%s6] sm:$0xff]
    %v315 = vlaneseq
    %v316 = vshrl.u32 %v315, 7
    %v317 = vsub.s32 0, %v316
    %v318 = vrot.slane %v313, %v317
    %v319 = vlaneseq
    %v320 = vshrl.u32 %v319, 7
    %v321 = vsub.s32 1, %v320
    %v322 = vrot.slane %v313, %v321
    %v323 = vlaneseq
    %v324 = vshrl.u32 %v323, 7
    %v325 = vsub.s32 2, %v324
    %v326 = vrot.slane %v313, %v325
    %v327 = vlaneseq
    %v328 = vshrl.u32 %v327, 7
    %v329 = vsub.s32 3, %v328
    %v330 = vrot.slane %v313, %v329
    %v331 = vlaneseq
    %v332 = vshrl.u32 %v331, 7
    %v333 = vsub.s32 4, %v332
    %v334 = vrot.slane %v313, %v333
    %v335 = vlaneseq
    %v336 = vshrl.u32 %v335, 7
    %v337 = vsub.s32 5, %v336
    %v338 = vrot.slane %v313, %v337
    %v339 = vlaneseq
    %v340 = vshrl.u32 %v339, 7
    %v341 = vsub.s32 6, %v340
    %v342 = vrot.slane %v313, %v341
    %v343 = vlaneseq
    %v344 = vshrl.u32 %v343, 7
    %v345 = vsub.s32 7, %v344
    %v346 = vrot.slane %v313, %v345
    %v419 = vunpack.c.l.b16 %v249
    %v420 = vunpack.c.h.b16 %v249
    %v421 = vunpack.c.l.b16 %v250
    %v422 = vunpack.c.h.b16 %v250
    %v423 = vunpack.c.l.b16 %v251
    %v424 = vunpack.c.h.b16 %v251
    %v425 = vunpack.c.l.b16 %v252
    %v426 = vunpack.c.h.b16 %v252
    %v427 = vunpack.c.l.b16 %v253
    %v428 = vunpack.c.h.b16 %v253
    %v429 = vunpack.c.l.b16 %v254
    %v430 = vunpack.c.h.b16 %v254
    %v431 = vunpack.c.l.b16 %v255
    %v432 = vunpack.c.h.b16 %v255
    %v433 = vunpack.c.l.b16 %v256
    %v434 = vunpack.c.h.b16 %v256
    %v435 = vunpack.c.l.b16 %v257
    %v436 = vunpack.c.h.b16 %v257
    %v437 = vunpack.c.l.b16 %v258
    %v438 = vunpack.c.h.b16 %v258
    %v439 = vunpack.c.l.b16 %v259
    %v440 = vunpack.c.h.b16 %v259
    %v441 = vunpack.c.l.b16 %v260
    %v442 = vunpack.c.h.b16 %v260
    %v443 = vunpack.c.l.b16 %v261
    %v444 = vunpack.c.h.b16 %v261
    %v445 = vunpack.c.l.b16 %v262
    %v446 = vunpack.c.h.b16 %v262
    %v447 = vunpack.c.l.b16 %v263
    %v448 = vunpack.c.h.b16 %v263
    %v449 = vunpack.c.l.b16 %v264
    %v450 = vunpack.c.h.b16 %v264
    %v451 = vunpack.c.l.b16 %v265
    %v452 = vunpack.c.h.b16 %v265
    %v453 = vunpack.c.l.b16 %v266
    %v454 = vunpack.c.h.b16 %v266
    %v455 = vunpack.c.l.b16 %v267
    %v456 = vunpack.c.h.b16 %v267
    %v457 = vunpack.c.l.b16 %v268
    %v458 = vunpack.c.h.b16 %v268
    %v459 = vunpack.c.l.b16 %v269
    %v460 = vunpack.c.h.b16 %v269
    %v461 = vunpack.c.l.b16 %v270
    %v462 = vunpack.c.h.b16 %v270
    %v463 = vunpack.c.l.b16 %v271
    %v464 = vunpack.c.h.b16 %v271
    %v465 = vunpack.c.l.b16 %v272
    %v466 = vunpack.c.h.b16 %v272
    %v467 = vunpack.c.l.b16 %v273
    %v468 = vunpack.c.h.b16 %v273
    %v469 = vunpack.c.l.b16 %v274
    %v470 = vunpack.c.h.b16 %v274
    %v471 = vunpack.c.l.b16 %v275
    %v472 = vunpack.c.h.b16 %v275
    %v473 = vunpack.c.l.b16 %v276
    %v474 = vunpack.c.h.b16 %v276
    %v475 = vunpack.c.l.b16 %v277
    %v476 = vunpack.c.h.b16 %v277
    %v477 = vunpack.c.l.b16 %v278
    %v478 = vunpack.c.h.b16 %v278
    %v479 = vunpack.c.l.b16 %v279
    %v480 = vunpack.c.h.b16 %v279
    %v481 = vunpack.c.l.b16 %v280
    %v482 = vunpack.c.h.b16 %v280
    %v483 = vunpack.c.l.b16 %v281
    %v484 = vunpack.c.h.b16 %v281
    %v485 = vunpack.c.l.b16 %v282
    %v486 = vunpack.c.h.b16 %v282
    %v487 = vunpack.c.l.b16 %v283
    %v488 = vunpack.c.h.b16 %v283
    %v489 = vunpack.c.l.b16 %v284
    %v490 = vunpack.c.h.b16 %v284
    %v491 = vunpack.c.l.b16 %v285
    %v492 = vunpack.c.h.b16 %v285
    %v493 = vunpack.c.l.b16 %v286
    %v494 = vunpack.c.h.b16 %v286
    %v495 = vunpack.c.l.b16 %v287
    %v496 = vunpack.c.h.b16 %v287
    %v497 = vunpack.c.l.b16 %v288
    %v498 = vunpack.c.h.b16 %v288
    %v499 = vunpack.c.l.b16 %v289
    %v500 = vunpack.c.h.b16 %v289
    %v501 = vunpack.c.l.b16 %v290
    %v502 = vunpack.c.h.b16 %v290
    %v503 = vunpack.c.l.b16 %v291
    %v504 = vunpack.c.h.b16 %v291
    %v505 = vunpack.c.l.b16 %v292
    %v506 = vunpack.c.h.b16 %v292
    %v507 = vunpack.c.l.b16 %v293
    %v508 = vunpack.c.h.b16 %v293
    %v509 = vunpack.c.l.b16 %v294
    %v510 = vunpack.c.h.b16 %v294
    %v511 = vunpack.c.l.b16 %v295
    %v512 = vunpack.c.h.b16 %v295
    %v513 = vunpack.c.l.b16 %v296
    %v514 = vunpack.c.h.b16 %v296
    %v515 = vunpack.c.l.b16 %v297
    %v516 = vunpack.c.h.b16 %v297
    %v517 = vunpack.c.l.b16 %v298
    %v518 = vunpack.c.h.b16 %v298
    %v519 = vunpack.c.l.b16 %v299
    %v520 = vunpack.c.h.b16 %v299
    %v521 = vunpack.c.l.b16 %v300
    %v522 = vunpack.c.h.b16 %v300
    %v523 = vunpack.c.l.b16 %v301
    %v524 = vunpack.c.h.b16 %v301
    %v525 = vunpack.c.l.b16 %v302
    %v526 = vunpack.c.h.b16 %v302
    %v527 = vunpack.c.l.b16 %v303
    %v528 = vunpack.c.h.b16 %v303
    %v529 = vunpack.c.l.b16 %v304
    %v530 = vunpack.c.h.b16 %v304
    %v531 = vunpack.c.l.b16 %v305
    %v532 = vunpack.c.h.b16 %v305
    %v533 = vunpack.c.l.b16 %v306
    %v534 = vunpack.c.h.b16 %v306
    %v535 = vunpack.c.l.b16 %v307
    %v536 = vunpack.c.h.b16 %v307
    %v537 = vunpack.c.l.b16 %v308
    %v538 = vunpack.c.h.b16 %v308
    %v539 = vunpack.c.l.b16 %v309
    %v540 = vunpack.c.h.b16 %v309
    %v541 = vunpack.c.l.b16 %v310
    %v542 = vunpack.c.h.b16 %v310
    %v543 = vunpack.c.l.b16 %v311
    %v544 = vunpack.c.h.b16 %v311
    %v545 = vunpack.c.l.b16 %v312
    %v546 = vunpack.c.h.b16 %v312
    %v547 = vpack.c.b16 %v427, %v419
    %v548 = vpack.c.b16 %v428, %v420
    %v549 = vpack.c.b16 %v429, %v421
    %v550 = vpack.c.b16 %v430, %v422
    %v551 = vpack.c.b16 %v431, %v423
    %v552 = vpack.c.b16 %v432, %v424
    %v553 = vpack.c.b16 %v433, %v425
    %v554 = vpack.c.b16 %v434, %v426
    %v555 = vpack.c.b16 %v443, %v435
    %v556 = vpack.c.b16 %v444, %v436
    %v557 = vpack.c.b16 %v445, %v437
    %v558 = vpack.c.b16 %v446, %v438
    %v559 = vpack.c.b16 %v447, %v439
    %v560 = vpack.c.b16 %v448, %v440
    %v561 = vpack.c.b16 %v449, %v441
    %v562 = vpack.c.b16 %v450, %v442
    %v563 = vpack.c.b16 %v459, %v451
    %v564 = vpack.c.b16 %v460, %v452
    %v565 = vpack.c.b16 %v461, %v453
    %v566 = vpack.c.b16 %v462, %v454
    %v567 = vpack.c.b16 %v463, %v455
    %v568 = vpack.c.b16 %v464, %v456
    %v569 = vpack.c.b16 %v465, %v457
    %v570 = vpack.c.b16 %v466, %v458
    %v571 = vpack.c.b16 %v475, %v467
    %v572 = vpack.c.b16 %v476, %v468
    %v573 = vpack.c.b16 %v477, %v469
    %v574 = vpack.c.b16 %v478, %v470
    %v575 = vpack.c.b16 %v479, %v471
    %v576 = vpack.c.b16 %v480, %v472
    %v577 = vpack.c.b16 %v481, %v473
    %v578 = vpack.c.b16 %v482, %v474
    %v579 = vpack.c.b16 %v491, %v483
    %v580 = vpack.c.b16 %v492, %v484
    %v581 = vpack.c.b16 %v493, %v485
    %v582 = vpack.c.b16 %v494, %v486
    %v583 = vpack.c.b16 %v495, %v487
    %v584 = vpack.c.b16 %v496, %v488
    %v585 = vpack.c.b16 %v497, %v489
    %v586 = vpack.c.b16 %v498, %v490
    %v587 = vpack.c.b16 %v507, %v499
    %v588 = vpack.c.b16 %v508, %v500
    %v589 = vpack.c.b16 %v509, %v501
    %v590 = vpack.c.b16 %v510, %v502
    %v591 = vpack.c.b16 %v511, %v503
    %v592 = vpack.c.b16 %v512, %v504
    %v593 = vpack.c.b16 %v513, %v505
    %v594 = vpack.c.b16 %v514, %v506
    %v595 = vpack.c.b16 %v523, %v515
    %v596 = vpack.c.b16 %v524, %v516
    %v597 = vpack.c.b16 %v525, %v517
    %v598 = vpack.c.b16 %v526, %v518
    %v599 = vpack.c.b16 %v527, %v519
    %v600 = vpack.c.b16 %v528, %v520
    %v601 = vpack.c.b16 %v529, %v521
    %v602 = vpack.c.b16 %v530, %v522
    %v603 = vpack.c.b16 %v539, %v531
    %v604 = vpack.c.b16 %v540, %v532
    %v605 = vpack.c.b16 %v541, %v533
    %v606 = vpack.c.b16 %v542, %v534
    %v607 = vpack.c.b16 %v543, %v535
    %v608 = vpack.c.b16 %v544, %v536
    %v609 = vpack.c.b16 %v545, %v537
    %v610 = vpack.c.b16 %v546, %v538
    %675 = vmatprep.subr.bf16.mxu0 %v548
    %676 = vmatpush1.bf16.msra.mxu0 %v547
    %677 = vmatprep.subr.bf16.mxu0 %v556
    %678 = vmatpush1.bf16.msra.mxu0 %v555
    %679 = vmatprep.subr.bf16.mxu0 %v564
    %680 = vmatpush1.bf16.msra.mxu0 %v563
    %681 = vmatprep.subr.bf16.mxu0 %v572
    %682 = vmatpush1.bf16.msra.mxu0 %v571
    %683 = vmatprep.subr.bf16.mxu0 %v580
    %684 = vmatpush1.bf16.msra.mxu0 %v579
    %685 = vmatprep.subr.bf16.mxu0 %v588
    %686 = vmatpush1.bf16.msra.mxu0 %v587
    %687 = vmatprep.subr.bf16.mxu0 %v596
    %688 = vmatpush1.bf16.msra.mxu0 %v595
    %689 = vmatprep.subr.bf16.mxu0 %v604
    %690 = vmatpush1.bf16.msra.mxu0 %v603
    %691 = vmatprep.subr.bf16.mxu0 0
    %692 = vmatpush1.bf16.msra.mxu0 0
    %693 = vmatprep.subr.bf16.mxu0 0
    %694 = vmatpush1.bf16.msra.mxu0 0
    %695 = vmatprep.subr.bf16.mxu0 0
    %696 = vmatpush1.bf16.msra.mxu0 0
    %697 = vmatprep.subr.bf16.mxu0 0
    %698 = vmatpush1.bf16.msra.mxu0 0
    %699 = vmatprep.subr.bf16.mxu0 0
    %700 = vmatpush1.bf16.msra.mxu0 0
    %701 = vmatprep.subr.bf16.mxu0 0
    %702 = vmatpush1.bf16.msra.mxu0 0
    %703 = vmatprep.subr.bf16.mxu0 0
    %704 = vmatpush1.bf16.msra.mxu0 0
    %705 = vmatprep.subr.bf16.mxu0 0
    %706 = vmatpush1.bf16.msra.mxu0 0
    %707 = vmatprep.mubr.bf16.mxu0 0
    %708 = vmatmul.mubr.bf16.gmra.mrb[0].mxu0 %v247
    %v709 = vpop.f32.mrb[0].mxu0
    %v710 = vadd.f32 %v318, %v709
    %v711 = vpop.f32.mrb[0].mxu0
    %v712 = vadd.f32 %v322, %v711
    %v713 = vpop.f32.mrb[0].mxu0
    %v714 = vadd.f32 %v318, %v713
    %v715 = vpop.f32.mrb[0].mxu0
    %v716 = vadd.f32 %v322, %v715
    %717 = vmatprep.mubr.bf16.mxu0 0
    %718 = vmatmul.mubr.bf16.gmra.mrb[0].mxu0 %v248
    %v719 = vpop.f32.mrb[0].mxu0
    %v720 = vadd.f32 %v318, %v719
    %v721 = vpop.f32.mrb[0].mxu0
    %v722 = vadd.f32 %v322, %v721
    %v723 = vpop.f32.mrb[0].mxu0
    %v724 = vadd.f32 %v318, %v723
    %v725 = vpop.f32.mrb[0].mxu0
    %v726 = vadd.f32 %v322, %v725
    %727 = vdwg.mxu0
    %728 = vmatprep.subr.bf16.mxu0 %v550
    %729 = vmatpush1.bf16.msra.mxu0 %v549
    %730 = vmatprep.subr.bf16.mxu0 %v558
    %731 = vmatpush1.bf16.msra.mxu0 %v557
    %732 = vmatprep.subr.bf16.mxu0 %v566
    %733 = vmatpush1.bf16.msra.mxu0 %v565
    %734 = vmatprep.subr.bf16.mxu0 %v574
    %735 = vmatpush1.bf16.msra.mxu0 %v573
    %736 = vmatprep.subr.bf16.mxu0 %v582
    %737 = vmatpush1.bf16.msra.mxu0 %v581
    %738 = vmatprep.subr.bf16.mxu0 %v590
    %739 = vmatpush1.bf16.msra.mxu0 %v589
    %740 = vmatprep.subr.bf16.mxu0 %v598
    %741 = vmatpush1.bf16.msra.mxu0 %v597
    %742 = vmatprep.subr.bf16.mxu0 %v606
    %743 = vmatpush1.bf16.msra.mxu0 %v605
    %744 = vmatprep.subr.bf16.mxu0 0
    %745 = vmatpush1.bf16.msra.mxu0 0
    %746 = vmatprep.subr.bf16.mxu0 0
    %747 = vmatpush1.bf16.msra.mxu0 0
    %748 = vmatprep.subr.bf16.mxu0 0
    %749 = vmatpush1.bf16.msra.mxu0 0
    %750 = vmatprep.subr.bf16.mxu0 0
    %751 = vmatpush1.bf16.msra.mxu0 0
    %752 = vmatprep.subr.bf16.mxu0 0
    %753 = vmatpush1.bf16.msra.mxu0 0
    %754 = vmatprep.subr.bf16.mxu0 0
    %755 = vmatpush1.bf16.msra.mxu0 0
    %756 = vmatprep.subr.bf16.mxu0 0
    %757 = vmatpush1.bf16.msra.mxu0 0
    %758 = vmatprep.subr.bf16.mxu0 0
    %759 = vmatpush1.bf16.msra.mxu0 0
    %760 = vmatprep.mubr.bf16.mxu0 0
    %761 = vmatmul.mubr.bf16.gmra.mrb[0].mxu0 %v247
    %v762 = vpop.f32.mrb[0].mxu0
    %v763 = vadd.f32 %v326, %v762
    %v764 = vpop.f32.mrb[0].mxu0
    %v765 = vadd.f32 %v330, %v764
    %v766 = vpop.f32.mrb[0].mxu0
    %v767 = vadd.f32 %v326, %v766
    %v768 = vpop.f32.mrb[0].mxu0
    %v769 = vadd.f32 %v330, %v768
    %770 = vmatprep.mubr.bf16.mxu0 0
    %771 = vmatmul.mubr.bf16.gmra.mrb[0].mxu0 %v248
    %v772 = vpop.f32.mrb[0].mxu0
    %v773 = vadd.f32 %v326, %v772
    %v774 = vpop.f32.mrb[0].mxu0
    %v775 = vadd.f32 %v330, %v774
    %v776 = vpop.f32.mrb[0].mxu0
    %v777 = vadd.f32 %v326, %v776
    %v778 = vpop.f32.mrb[0].mxu0
    %v779 = vadd.f32 %v330, %v778
    %780 = vdwg.mxu0
    %781 = vmatprep.subr.bf16.mxu0 %v552
    %782 = vmatpush1.bf16.msra.mxu0 %v551
    %783 = vmatprep.subr.bf16.mxu0 %v560
    %784 = vmatpush1.bf16.msra.mxu0 %v559
    %785 = vmatprep.subr.bf16.mxu0 %v568
    %786 = vmatpush1.bf16.msra.mxu0 %v567
    %787 = vmatprep.subr.bf16.mxu0 %v576
    %788 = vmatpush1.bf16.msra.mxu0 %v575
    %789 = vmatprep.subr.bf16.mxu0 %v584
    %790 = vmatpush1.bf16.msra.mxu0 %v583
    %791 = vmatprep.subr.bf16.mxu0 %v592
    %792 = vmatpush1.bf16.msra.mxu0 %v591
    %793 = vmatprep.subr.bf16.mxu0 %v600
    %794 = vmatpush1.bf16.msra.mxu0 %v599
    %795 = vmatprep.subr.bf16.mxu0 %v608
    %796 = vmatpush1.bf16.msra.mxu0 %v607
    %797 = vmatprep.subr.bf16.mxu0 0
    %798 = vmatpush1.bf16.msra.mxu0 0
    %799 = vmatprep.subr.bf16.mxu0 0
    %800 = vmatpush1.bf16.msra.mxu0 0
    %801 = vmatprep.subr.bf16.mxu0 0
    %802 = vmatpush1.bf16.msra.mxu0 0
    %803 = vmatprep.subr.bf16.mxu0 0
    %804 = vmatpush1.bf16.msra.mxu0 0
    %805 = vmatprep.subr.bf16.mxu0 0
    %806 = vmatpush1.bf16.msra.mxu0 0
    %807 = vmatprep.subr.bf16.mxu0 0
    %808 = vmatpush1.bf16.msra.mxu0 0
    %809 = vmatprep.subr.bf16.mxu0 0
    %810 = vmatpush1.bf16.msra.mxu0 0
    %811 = vmatprep.subr.bf16.mxu0 0
    %812 = vmatpush1.bf16.msra.mxu0 0
    %813 = vmatprep.mubr.bf16.mxu0 0
    %814 = vmatmul.mubr.bf16.gmra.mrb[0].mxu0 %v247
    %v815 = vpop.f32.mrb[0].mxu0
    %v816 = vadd.f32 %v334, %v815
    %v817 = vpop.f32.mrb[0].mxu0
    %v818 = vadd.f32 %v338, %v817
    %v819 = vpop.f32.mrb[0].mxu0
    %v820 = vadd.f32 %v334, %v819
    %v821 = vpop.f32.mrb[0].mxu0
    %v822 = vadd.f32 %v338, %v821
    %823 = vmatprep.mubr.bf16.mxu0 0
    %824 = vmatmul.mubr.bf16.gmra.mrb[0].mxu0 %v248
    %v825 = vpop.f32.mrb[0].mxu0
    %v826 = vadd.f32 %v334, %v825
    %v827 = vpop.f32.mrb[0].mxu0
    %v828 = vadd.f32 %v338, %v827
    %v829 = vpop.f32.mrb[0].mxu0
    %v830 = vadd.f32 %v334, %v829
    %v831 = vpop.f32.mrb[0].mxu0
    %v832 = vadd.f32 %v338, %v831
    %833 = vdwg.mxu0
    %834 = vmatprep.subr.bf16.mxu0 %v554
    %835 = vmatpush1.bf16.msra.mxu0 %v553
    %836 = vmatprep.subr.bf16.mxu0 %v562
    %837 = vmatpush1.bf16.msra.mxu0 %v561
    %838 = vmatprep.subr.bf16.mxu0 %v570
    %839 = vmatpush1.bf16.msra.mxu0 %v569
    %840 = vmatprep.subr.bf16.mxu0 %v578
    %841 = vmatpush1.bf16.msra.mxu0 %v577
    %842 = vmatprep.subr.bf16.mxu0 %v586
    %843 = vmatpush1.bf16.msra.mxu0 %v585
    %844 = vmatprep.subr.bf16.mxu0 %v594
    %845 = vmatpush1.bf16.msra.mxu0 %v593
    %846 = vmatprep.subr.bf16.mxu0 %v602
    %847 = vmatpush1.bf16.msra.mxu0 %v601
    %848 = vmatprep.subr.bf16.mxu0 %v610
    %849 = vmatpush1.bf16.msra.mxu0 %v609
    %850 = vmatprep.subr.bf16.mxu0 0
    %851 = vmatpush1.bf16.msra.mxu0 0
    %852 = vmatprep.subr.bf16.mxu0 0
    %853 = vmatpush1.bf16.msra.mxu0 0
    %854 = vmatprep.subr.bf16.mxu0 0
    %855 = vmatpush1.bf16.msra.mxu0 0
    %856 = vmatprep.subr.bf16.mxu0 0
    %857 = vmatpush1.bf16.msra.mxu0 0
    %858 = vmatprep.subr.bf16.mxu0 0
    %859 = vmatpush1.bf16.msra.mxu0 0
    %860 = vmatprep.subr.bf16.mxu0 0
    %861 = vmatpush1.bf16.msra.mxu0 0
    %862 = vmatprep.subr.bf16.mxu0 0
    %863 = vmatpush1.bf16.msra.mxu0 0
    %864 = vmatprep.subr.bf16.mxu0 0
    %865 = vmatpush1.bf16.msra.mxu0 0
    %866 = vmatprep.mubr.bf16.mxu0 0
    %867 = vmatmul.mubr.bf16.gmra.mrb[0].mxu0 %v247
    %v868 = vpop.f32.mrb[0].mxu0
    %v869 = vadd.f32 %v342, %v868
    %v870 = vpop.f32.mrb[0].mxu0
    %v871 = vadd.f32 %v346, %v870
    %v872 = vpop.f32.mrb[0].mxu0
    %v873 = vadd.f32 %v342, %v872
    %v874 = vpop.f32.mrb[0].mxu0
    %v875 = vadd.f32 %v346, %v874
    %876 = vmatprep.mubr.bf16.mxu0 0
    %877 = vmatmul.mubr.bf16.gmra.mrb[0].mxu0 %v248
    %v878 = vpop.f32.mrb[0].mxu0
    %v879 = vadd.f32 %v342, %v878
    %v880 = vpop.f32.mrb[0].mxu0
    %v881 = vadd.f32 %v346, %v880
    %v882 = vpop.f32.mrb[0].mxu0
    %v883 = vadd.f32 %v342, %v882
    %v884 = vpop.f32.mrb[0].mxu0
    %v885 = vadd.f32 %v346, %v884
    %886 = vdwg.mxu0
    %v887 = vmax.f32 %v710, 0.0
    %v888 = vmax.f32 %v712, 0.0
    %v889 = vmax.f32 %v763, 0.0
    %v890 = vmax.f32 %v765, 0.0
    %v891 = vmax.f32 %v816, 0.0
    %v892 = vmax.f32 %v818, 0.0
    %v893 = vmax.f32 %v869, 0.0
    %v894 = vmax.f32 %v871, 0.0
    %v895 = vmax.f32 %v714, 0.0
    %v896 = vmax.f32 %v716, 0.0
    %v897 = vmax.f32 %v767, 0.0
    %v898 = vmax.f32 %v769, 0.0
    %v899 = vmax.f32 %v820, 0.0
    %v900 = vmax.f32 %v822, 0.0
    %v901 = vmax.f32 %v873, 0.0
    %v902 = vmax.f32 %v875, 0.0
    %v903 = vmax.f32 %v720, 0.0
    %v904 = vmax.f32 %v722, 0.0
    %v905 = vmax.f32 %v773, 0.0
    %v906 = vmax.f32 %v775, 0.0
    %v907 = vmax.f32 %v826, 0.0
    %v908 = vmax.f32 %v828, 0.0
    %v909 = vmax.f32 %v879, 0.0
    %v910 = vmax.f32 %v881, 0.0
    %v911 = vmax.f32 %v724, 0.0
    %v912 = vmax.f32 %v726, 0.0
    %v913 = vmax.f32 %v777, 0.0
    %v914 = vmax.f32 %v779, 0.0
    %v915 = vmax.f32 %v830, 0.0
    %v916 = vmax.f32 %v832, 0.0
    %v917 = vmax.f32 %v883, 0.0
    %v918 = vmax.f32 %v885, 0.0
    %v919 = vmax.f32 %v887, %v895
    %v920 = vrot.slane %v919, 4
    %v921 = vmax.f32 %v919, %v920
    %v922 = vrot.slane %v921, 2
    %v923 = vmax.f32 %v921, %v922
    %v924 = vrot.slane %v923, 1
    %v925 = vmax.f32 %v923, %v924
    %v926 = vmax.f32 %v888, %v896
    %v927 = vrot.slane %v926, 4
    %v928 = vmax.f32 %v926, %v927
    %v929 = vrot.slane %v928, 2
    %v930 = vmax.f32 %v928, %v929
    %v931 = vrot.slane %v930, 1
    %v932 = vmax.f32 %v930, %v931
    %v933 = vmax.f32 %v889, %v897
    %v934 = vrot.slane %v933, 4
    %v935 = vmax.f32 %v933, %v934
    %v936 = vrot.slane %v935, 2
    %v937 = vmax.f32 %v935, %v936
    %v938 = vrot.slane %v937, 1
    %v939 = vmax.f32 %v937, %v938
    %v940 = vmax.f32 %v890, %v898
    %v941 = vrot.slane %v940, 4
    %v942 = vmax.f32 %v940, %v941
    %v943 = vrot.slane %v942, 2
    %v944 = vmax.f32 %v942, %v943
    %v945 = vrot.slane %v944, 1
    %v946 = vmax.f32 %v944, %v945
    %v947 = vmax.f32 %v891, %v899
    %v948 = vrot.slane %v947, 4
    %v949 = vmax.f32 %v947, %v948
    %v950 = vrot.slane %v949, 2
    %v951 = vmax.f32 %v949, %v950
    %v952 = vrot.slane %v951, 1
    %v953 = vmax.f32 %v951, %v952
    %v954 = vmax.f32 %v892, %v900
    %v955 = vrot.slane %v954, 4
    %v956 = vmax.f32 %v954, %v955
    %v957 = vrot.slane %v956, 2
    %v958 = vmax.f32 %v956, %v957
    %v959 = vrot.slane %v958, 1
    %v960 = vmax.f32 %v958, %v959
    %v961 = vmax.f32 %v893, %v901
    %v962 = vrot.slane %v961, 4
    %v963 = vmax.f32 %v961, %v962
    %v964 = vrot.slane %v963, 2
    %v965 = vmax.f32 %v963, %v964
    %v966 = vrot.slane %v965, 1
    %v967 = vmax.f32 %v965, %v966
    %v968 = vmax.f32 %v894, %v902
    %v969 = vrot.slane %v968, 4
    %v970 = vmax.f32 %v968, %v969
    %v971 = vrot.slane %v970, 2
    %v972 = vmax.f32 %v970, %v971
    %v973 = vrot.slane %v972, 1
    %v974 = vmax.f32 %v972, %v973
    %v975 = vmax.f32 %v903, %v911
    %v976 = vrot.slane %v975, 4
    %v977 = vmax.f32 %v975, %v976
    %v978 = vrot.slane %v977, 2
    %v979 = vmax.f32 %v977, %v978
    %v980 = vrot.slane %v979, 1
    %v981 = vmax.f32 %v979, %v980
    %v982 = vmax.f32 %v904, %v912
    %v983 = vrot.slane %v982, 4
    %v984 = vmax.f32 %v982, %v983
    %v985 = vrot.slane %v984, 2
    %v986 = vmax.f32 %v984, %v985
    %v987 = vrot.slane %v986, 1
    %v988 = vmax.f32 %v986, %v987
    %v989 = vmax.f32 %v905, %v913
    %v990 = vrot.slane %v989, 4
    %v991 = vmax.f32 %v989, %v990
    %v992 = vrot.slane %v991, 2
    %v993 = vmax.f32 %v991, %v992
    %v994 = vrot.slane %v993, 1
    %v995 = vmax.f32 %v993, %v994
    %v996 = vmax.f32 %v906, %v914
    %v997 = vrot.slane %v996, 4
    %v998 = vmax.f32 %v996, %v997
    %v999 = vrot.slane %v998, 2
    %v1000 = vmax.f32 %v998, %v999
    %v1001 = vrot.slane %v1000, 1
    %v1002 = vmax.f32 %v1000, %v1001
    %v1003 = vmax.f32 %v907, %v915
    %v1004 = vrot.slane %v1003, 4
    %v1005 = vmax.f32 %v1003, %v1004
    %v1006 = vrot.slane %v1005, 2
    %v1007 = vmax.f32 %v1005, %v1006
    %v1008 = vrot.slane %v1007, 1
    %v1009 = vmax.f32 %v1007, %v1008
    %v1010 = vmax.f32 %v908, %v916
    %v1011 = vrot.slane %v1010, 4
    %v1012 = vmax.f32 %v1010, %v1011
    %v1013 = vrot.slane %v1012, 2
    %v1014 = vmax.f32 %v1012, %v1013
    %v1015 = vrot.slane %v1014, 1
    %v1016 = vmax.f32 %v1014, %v1015
    %v1017 = vmax.f32 %v909, %v917
    %v1018 = vrot.slane %v1017, 4
    %v1019 = vmax.f32 %v1017, %v1018
    %v1020 = vrot.slane %v1019, 2
    %v1021 = vmax.f32 %v1019, %v1020
    %v1022 = vrot.slane %v1021, 1
    %v1023 = vmax.f32 %v1021, %v1022
    %v1024 = vmax.f32 %v910, %v918
    %v1025 = vrot.slane %v1024, 4
    %v1026 = vmax.f32 %v1024, %v1025
    %v1027 = vrot.slane %v1026, 2
    %v1028 = vmax.f32 %v1026, %v1027
    %v1029 = vrot.slane %v1028, 1
    %v1030 = vmax.f32 %v1028, %v1029
    %v1031 = vpack.c.bf16 %v925, %v925
    %v1032 = vpack.c.bf16 %v932, %v932
    %v1033 = vpack.c.bf16 %v939, %v939
    %v1034 = vpack.c.bf16 %v946, %v946
    %v1035 = vpack.c.bf16 %v953, %v953
    %v1036 = vpack.c.bf16 %v960, %v960
    %v1037 = vpack.c.bf16 %v967, %v967
    %v1038 = vpack.c.bf16 %v974, %v974
    %v1039 = vpack.c.bf16 %v981, %v981
    %v1040 = vpack.c.bf16 %v988, %v988
    %v1041 = vpack.c.bf16 %v995, %v995
    %v1042 = vpack.c.bf16 %v1002, %v1002
    %v1043 = vpack.c.bf16 %v1009, %v1009
    %v1044 = vpack.c.bf16 %v1016, %v1016
    %v1045 = vpack.c.bf16 %v1023, %v1023
    %v1046 = vpack.c.bf16 %v1030, %v1030
    %v1063 = vcombine.low %v1031, %v1032
    %v1064 = vcombine.low %v1033, %v1034
    %v1065 = vcombine.low %v1035, %v1036
    %v1066 = vcombine.low %v1037, %v1038
    %v1068 = vunpack.c.l.s4 1966171168
    %v1069 = vunpack.c.0.s8 %v1068
    %v1070 = vlaneseq
    %v1071 = vshrl.u32 %v1070, 7
    %v1072 = vsub.s32 %v1069, %v1071
    %v1073 = vrot.slane %v1063, %v1072
    %v1075 = vunpack.c.l.s4 1966171168
    %v1076 = vunpack.c.0.s8 %v1075
    %v1077 = vlaneseq
    %v1078 = vshrl.u32 %v1077, 7
    %v1079 = vsub.s32 %v1076, %v1078
    %v1080 = vrot.slane %v1064, %v1079
    %v1082 = vunpack.c.l.s4 1966171168
    %v1083 = vunpack.c.0.s8 %v1082
    %v1084 = vlaneseq
    %v1085 = vshrl.u32 %v1084, 7
    %v1086 = vsub.s32 %v1083, %v1085
    %v1087 = vrot.slane %v1065, %v1086
    %v1089 = vunpack.c.l.s4 1966171168
    %v1090 = vunpack.c.0.s8 %v1089
    %v1091 = vlaneseq
    %v1092 = vshrl.u32 %v1091, 7
    %v1093 = vsub.s32 %v1090, %v1092
    %v1094 = vrot.slane %v1066, %v1093
    %v1095 = vcombine.low %v1073, %v1080
    %v1096 = vcombine.low %v1087, %v1094
    %v1098 = vunpack.c.l.s4 1966171168
    %v1099 = vunpack.c.0.s8 %v1098
    %v1100 = vlaneseq
    %v1101 = vshrl.u32 %v1100, 7
    %v1102 = vsub.s32 %v1099, %v1101
    %v1103 = vrot.slane %v1095, %v1102
    %v1105 = vunpack.c.l.s4 1966171168
    %v1106 = vunpack.c.0.s8 %v1105
    %v1107 = vlaneseq
    %v1108 = vshrl.u32 %v1107, 7
    %v1109 = vsub.s32 %v1106, %v1108
    %v1110 = vrot.slane %v1096, %v1109
    %v1111 = vcombine.low %v1103, %v1110
    %v1112 = vcombine.low %v1039, %v1040
    %v1113 = vcombine.low %v1041, %v1042
    %v1114 = vcombine.low %v1043, %v1044
    %v1115 = vcombine.low %v1045, %v1046
    %v1117 = vunpack.c.l.s4 1966171168
    %v1118 = vunpack.c.0.s8 %v1117
    %v1119 = vlaneseq
    %v1120 = vshrl.u32 %v1119, 7
    %v1121 = vsub.s32 %v1118, %v1120
    %v1122 = vrot.slane %v1112, %v1121
    %v1124 = vunpack.c.l.s4 1966171168
    %v1125 = vunpack.c.0.s8 %v1124
    %v1126 = vlaneseq
    %v1127 = vshrl.u32 %v1126, 7
    %v1128 = vsub.s32 %v1125, %v1127
    %v1129 = vrot.slane %v1113, %v1128
    %v1131 = vunpack.c.l.s4 1966171168
    %v1132 = vunpack.c.0.s8 %v1131
    %v1133 = vlaneseq
    %v1134 = vshrl.u32 %v1133, 7
    %v1135 = vsub.s32 %v1132, %v1134
    %v1136 = vrot.slane %v1114, %v1135
    %v1138 = vunpack.c.l.s4 1966171168
    %v1139 = vunpack.c.0.s8 %v1138
    %v1140 = vlaneseq
    %v1141 = vshrl.u32 %v1140, 7
    %v1142 = vsub.s32 %v1139, %v1141
    %v1143 = vrot.slane %v1115, %v1142
    %v1144 = vcombine.low %v1122, %v1129
    %v1145 = vcombine.low %v1136, %v1143
    %v1147 = vunpack.c.l.s4 1966171168
    %v1148 = vunpack.c.0.s8 %v1147
    %v1149 = vlaneseq
    %v1150 = vshrl.u32 %v1149, 7
    %v1151 = vsub.s32 %v1148, %v1150
    %v1152 = vrot.slane %v1144, %v1151
    %v1154 = vunpack.c.l.s4 1966171168
    %v1155 = vunpack.c.0.s8 %v1154
    %v1156 = vlaneseq
    %v1157 = vshrl.u32 %v1156, 7
    %v1158 = vsub.s32 %v1155, %v1157
    %v1159 = vrot.slane %v1145, %v1158
    %v1160 = vcombine.low %v1152, %v1159
    %v1161 = vcombine.high %v1111, %v1111
    %v1163 = vunpack.c.l.s4 1935823168
    %v1164 = vunpack.c.0.s8 %v1163
    %v1165 = vlaneseq
    %v1166 = vshrl.u32 %v1165, 7
    %v1167 = vsub.s32 %v1164, %v1166
    %v1168 = vrot.slane %v1111, %v1167
    %v1170 = vunpack.c.l.s4 1935823168
    %v1171 = vunpack.c.0.s8 %v1170
    %v1172 = vlaneseq
    %v1173 = vshrl.u32 %v1172, 7
    %v1174 = vsub.s32 %v1171, %v1173
    %v1175 = vrot.slane %v1161, %v1174
    %v1176 = vcombine.high %v1168, %v1168
    %v1177 = vcombine.high %v1175, %v1175
    %v1179 = vunpack.c.l.s4 1935823168
    %v1180 = vunpack.c.0.s8 %v1179
    %v1181 = vlaneseq
    %v1182 = vshrl.u32 %v1181, 7
    %v1183 = vsub.s32 %v1180, %v1182
    %v1184 = vrot.slane %v1168, %v1183
    %v1186 = vunpack.c.l.s4 1935823168
    %v1187 = vunpack.c.0.s8 %v1186
    %v1188 = vlaneseq
    %v1189 = vshrl.u32 %v1188, 7
    %v1190 = vsub.s32 %v1187, %v1189
    %v1191 = vrot.slane %v1176, %v1190
    %v1193 = vunpack.c.l.s4 1935823168
    %v1194 = vunpack.c.0.s8 %v1193
    %v1195 = vlaneseq
    %v1196 = vshrl.u32 %v1195, 7
    %v1197 = vsub.s32 %v1194, %v1196
    %v1198 = vrot.slane %v1175, %v1197
    %v1200 = vunpack.c.l.s4 1935823168
    %v1201 = vunpack.c.0.s8 %v1200
    %v1202 = vlaneseq
    %v1203 = vshrl.u32 %v1202, 7
    %v1204 = vsub.s32 %v1201, %v1203
    %v1205 = vrot.slane %v1177, %v1204
    %v1206 = vcombine.high %v1160, %v1160
    %v1208 = vunpack.c.l.s4 1935823168
    %v1209 = vunpack.c.0.s8 %v1208
    %v1210 = vlaneseq
    %v1211 = vshrl.u32 %v1210, 7
    %v1212 = vsub.s32 %v1209, %v1211
    %v1213 = vrot.slane %v1160, %v1212
    %v1215 = vunpack.c.l.s4 1935823168
    %v1216 = vunpack.c.0.s8 %v1215
    %v1217 = vlaneseq
    %v1218 = vshrl.u32 %v1217, 7
    %v1219 = vsub.s32 %v1216, %v1218
    %v1220 = vrot.slane %v1206, %v1219
    %v1221 = vcombine.high %v1213, %v1213
    %v1222 = vcombine.high %v1220, %v1220
    %v1224 = vunpack.c.l.s4 1935823168
    %v1225 = vunpack.c.0.s8 %v1224
    %v1226 = vlaneseq
    %v1227 = vshrl.u32 %v1226, 7
    %v1228 = vsub.s32 %v1225, %v1227
    %v1229 = vrot.slane %v1213, %v1228
    %v1231 = vunpack.c.l.s4 1935823168
    %v1232 = vunpack.c.0.s8 %v1231
    %v1233 = vlaneseq
    %v1234 = vshrl.u32 %v1233, 7
    %v1235 = vsub.s32 %v1232, %v1234
    %v1236 = vrot.slane %v1221, %v1235
    %v1238 = vunpack.c.l.s4 1935823168
    %v1239 = vunpack.c.0.s8 %v1238
    %v1240 = vlaneseq
    %v1241 = vshrl.u32 %v1240, 7
    %v1242 = vsub.s32 %v1239, %v1241
    %v1243 = vrot.slane %v1220, %v1242
    %v1245 = vunpack.c.l.s4 1935823168
    %v1246 = vunpack.c.0.s8 %v1245
    %v1247 = vlaneseq
    %v1248 = vshrl.u32 %v1247, 7
    %v1249 = vsub.s32 %v1246, %v1248
    %v1250 = vrot.slane %v1222, %v1249
    %v1251 = vunpack.c.l.b16 %v1184
    %v1252 = vunpack.c.h.b16 %v1184
    %v1253 = vunpack.c.l.b16 %v1191
    %v1254 = vunpack.c.h.b16 %v1191
    %v1255 = vunpack.c.l.b16 %v1198
    %v1256 = vunpack.c.h.b16 %v1198
    %v1257 = vunpack.c.l.b16 %v1205
    %v1258 = vunpack.c.h.b16 %v1205
    %v1259 = vunpack.c.l.b16 %v1229
    %v1260 = vunpack.c.h.b16 %v1229
    %v1261 = vunpack.c.l.b16 %v1236
    %v1262 = vunpack.c.h.b16 %v1236
    %v1263 = vunpack.c.l.b16 %v1243
    %v1264 = vunpack.c.h.b16 %v1243
    %v1265 = vunpack.c.l.b16 %v1250
    %v1266 = vunpack.c.h.b16 %v1250
    %v1267 = vrot.slane %v1259, 7
    %vm1268 = vcmask 1041409
    %v1269 = vsel %vm1268, %v1267, %v1251
    %v1270 = vrot.slane %v1260, 7
    %v1271 = vsel %vm1268, %v1270, %v1252
    %v1272 = vrot.slane %v1261, 7
    %v1273 = vsel %vm1268, %v1272, %v1253
    %v1274 = vrot.slane %v1262, 7
    %v1275 = vsel %vm1268, %v1274, %v1254
    %v1276 = vrot.slane %v1263, 7
    %v1277 = vsel %vm1268, %v1276, %v1255
    %v1278 = vrot.slane %v1264, 7
    %v1279 = vsel %vm1268, %v1278, %v1256
    %v1280 = vrot.slane %v1265, 7
    %v1281 = vsel %vm1268, %v1280, %v1257
    %v1282 = vrot.slane %v1266, 7
    %v1283 = vsel %vm1268, %v1282, %v1258
    %v1284 = vpack.c.b16 %v1271, %v1269
    %v1285 = vpack.c.b16 %v1275, %v1273
    %v1286 = vpack.c.b16 %v1279, %v1277
    %v1287 = vpack.c.b16 %v1283, %v1281
    %v1289 = vunpack.c.l.s4 1966171168
    %v1290 = vunpack.c.0.s8 %v1289
    %v1291 = vlaneseq
    %v1292 = vshrl.u32 %v1291, 7
    %v1293 = vsub.s32 %v1290, %v1292
    %v1294 = vrot.slane %v1284, %v1293
    %v1296 = vunpack.c.l.s4 1966171168
    %v1297 = vunpack.c.0.s8 %v1296
    %v1298 = vlaneseq
    %v1299 = vshrl.u32 %v1298, 7
    %v1300 = vsub.s32 %v1297, %v1299
    %v1301 = vrot.slane %v1285, %v1300
    %v1303 = vunpack.c.l.s4 1966171168
    %v1304 = vunpack.c.0.s8 %v1303
    %v1305 = vlaneseq
    %v1306 = vshrl.u32 %v1305, 7
    %v1307 = vsub.s32 %v1304, %v1306
    %v1308 = vrot.slane %v1286, %v1307
    %v1310 = vunpack.c.l.s4 1966171168
    %v1311 = vunpack.c.0.s8 %v1310
    %v1312 = vlaneseq
    %v1313 = vshrl.u32 %v1312, 7
    %v1314 = vsub.s32 %v1311, %v1313
    %v1315 = vrot.slane %v1287, %v1314
    %v1316 = vcombine.low %v1294, %v1301
    %v1317 = vcombine.low %v1308, %v1315
    %v1319 = vunpack.c.l.s4 1966171168
    %v1320 = vunpack.c.0.s8 %v1319
    %v1321 = vlaneseq
    %v1322 = vshrl.u32 %v1321, 7
    %v1323 = vsub.s32 %v1320, %v1322
    %v1324 = vrot.slane %v1316, %v1323
    %v1326 = vunpack.c.l.s4 1966171168
    %v1327 = vunpack.c.0.s8 %v1326
    %v1328 = vlaneseq
    %v1329 = vshrl.u32 %v1328, 7
    %v1330 = vsub.s32 %v1327, %v1329
    %v1331 = vrot.slane %v1317, %v1330
    %v1332 = vcombine.low %v1324, %v1331
    %1334 = vst [vmem:[#allocation5] sm:$0xff] %v1332
    // Predicated region
    $region34: #{tpu_custom_call.1} parent=1 // pred_check
      _
    $region35: #{tpu_custom_call.1} parent=1 // pred_check_branch
      %1336 = sbr.rel (0) target = $region37
    $region36: #{tpu_custom_call.1} parent=1 // pred_region
      %s1338 = ssub.s32 128, 128
      %1339 = vsyncadd [#allocation4], %s1338
      %s1341 = sshll.u32 [#allocation5], 4
      %s1342 = int_to_ptr.vmem [resolvable:$true] %s1341
      %1344 = dma.vmem_to_hbm [thread:$0]  %s1342, 128, %s7, [#allocation4]
    $region37: #{tpu_custom_call.1} parent=1 // pred_fallthru
      _
    // Predicated region
    $region38: #{tpu_custom_call.1} parent=1 // pred_check
      _
    $region39: #{tpu_custom_call.1} parent=1 // pred_check_branch
      %1346 = sbr.rel (0) target = $region41
    $region40: #{tpu_custom_call.1} parent=1 // pred_region
      %1347 = dma.done [#allocation4], 128
    $region41: #{tpu_custom_call.1} parent=1 // pred_fallthru
      _
    %1348 = vsyncpa [#allocation3], 1
    %1349 = vsyncpa [#allocation4], 1

</llo_original>
